<compile_context>
chip_gen: v5e
topology: v5e:2x2
jax: 0.10.0
libtpu: 0.0.40
codegen_flags: <defaults>
</compile_context>

<pallas_src>
import functools

import jax
import jax.numpy as jnp
from jax.experimental import pallas as pl
from jax.experimental.pallas import tpu as pltpu

LANE = 128          # vreg lane width: hidden / action dims are padded to this
F32_SUBLANE = 8
BF16_SUBLANE = 16


def _round_up(x, m):
    return ((x + m - 1) // m) * m


def qnetwork_kernel(x_ref, w_ref, b_ref, o_ref, *, s_pad, h_pad):
    # x tile: [TB, s_pad] f32 (streamed per grid step).
    # w_ref:  [s_pad + 2*h_pad, h_pad] bf16 slab, rows [0:s_pad]=w1,
    #         [s_pad:s_pad+h_pad]=w2, [s_pad+h_pad:s_pad+2*h_pad]=w3 (VMEM-resident).
    # b_ref:  [8, h_pad] f32, rows 0/1/2 = b1/b2/b3 (VMEM-resident).
    x = x_ref[...].astype(jnp.bfloat16)
    w1 = w_ref[0:s_pad, :]
    w2 = w_ref[s_pad:s_pad + h_pad, :]
    w3 = w_ref[s_pad + h_pad:s_pad + 2 * h_pad, :]

    # fc1 + relu  (bf16 MXU, f32 accumulate; bias-add/ReLU in f32 on the VPU)
    h1 = jnp.dot(x, w1, preferred_element_type=jnp.float32) + b_ref[0:1, :]
    h1 = jnp.maximum(h1, 0.0)
    # fc2 + relu
    h2 = jnp.dot(h1.astype(jnp.bfloat16), w2,
                 preferred_element_type=jnp.float32) + b_ref[1:2, :]
    h2 = jnp.maximum(h2, 0.0)
    # fc3 (no activation)
    out = jnp.dot(h2.astype(jnp.bfloat16), w3,
                  preferred_element_type=jnp.float32) + b_ref[2:3, :]
    o_ref[...] = out.astype(o_ref.dtype)


def qnetwork_forward(x, params, *, tile_b=256):
    """x: [B, state_size] float32; params: dict of w1,b1,w2,b2,w3,b3
    (weights stored [in_features, out_features], biases [1, out_features])."""
    w1, b1, w2, b2, w3, b3 = (params[k] for k in ("w1", "b1", "w2", "b2", "w3", "b3"))
    B, S = x.shape
    H = w1.shape[1]
    A = w3.shape[1]

    s_pad = _round_up(S, BF16_SUBLANE)               # sublane-aligned K for bf16 slab
    h_pad = _round_up(max(H, A, LANE), LANE)         # lane-dense hidden/output width

    # --- pack the three weight matrices into one lane-dense bf16 slab (1 DMA) ---
    def pad2(a, rows, cols):
        return jnp.pad(a, ((0, rows - a.shape[0]), (0, cols - a.shape[1])))

    w_slab = jnp.concatenate(
        [pad2(w1, s_pad, h_pad), pad2(w2, h_pad, h_pad), pad2(w3, h_pad, h_pad)],
        axis=0,
    ).astype(jnp.bfloat16)

    # --- pack the three biases into one f32 [8, h_pad] block (1 DMA) ---
    b_slab = jnp.zeros((F32_SUBLANE, h_pad), jnp.float32)
    b_slab = b_slab.at[0, :H].set(b1.reshape(-1))
    b_slab = b_slab.at[1, :H].set(b2.reshape(-1))
    b_slab = b_slab.at[2, :A].set(b3.reshape(-1))

    # --- batch tiling: pad B to a multiple of the batch tile ---
    tb = _round_up(min(tile_b, _round_up(B, F32_SUBLANE)), F32_SUBLANE)
    b_pad = _round_up(B, tb)
    x_p = jnp.pad(x.astype(jnp.float32), ((0, b_pad - B), (0, s_pad - S)))

    grid = (b_pad // tb,)
    kernel = functools.partial(qnetwork_kernel, s_pad=s_pad, h_pad=h_pad)

    flops = 2 * b_pad * (s_pad * h_pad + 2 * h_pad * h_pad)
    bytes_accessed = (x_p.size * 4 + w_slab.size * 2 + b_slab.size * 4
                      + b_pad * h_pad * 4)

    out = pl.pallas_call(
        kernel,
        out_shape=jax.ShapeDtypeStruct((b_pad, h_pad), jnp.float32),
        grid_spec=pltpu.PrefetchScalarGridSpec(
            num_scalar_prefetch=0,
            grid=grid,
            in_specs=[
                pl.BlockSpec((tb, s_pad), lambda i: (i, 0)),     # x: streamed per tile
                pl.BlockSpec(w_slab.shape, lambda i: (0, 0)),    # weights: VMEM-resident
                pl.BlockSpec(b_slab.shape, lambda i: (0, 0)),    # biases: VMEM-resident
            ],
            out_specs=pl.BlockSpec((tb, h_pad), lambda i: (i, 0)),
        ),
        compiler_params=pltpu.CompilerParams(
            dimension_semantics=("parallel",),      # shards batch tiles across TCs (v7x)
        ),
        cost_estimate=pl.CostEstimate(
            flops=flops, transcendentals=0, bytes_accessed=bytes_accessed),
    )(x_p, w_slab, b_slab)

    return out[:B, :A]


def init_params(key, state_size, action_size, hidden_size=64):
    """Deterministic init mimicking PyTorch nn.Linear default U(-1/sqrt(fan_in), 1/sqrt(fan_in))."""
    def linear(k, fan_in, fan_out):
        kw, kb = jax.random.split(k)
        bound = 1.0 / jnp.sqrt(jnp.float32(fan_in))
        w = jax.random.uniform(kw, (fan_in, fan_out), jnp.float32, -bound, bound)
        b = jax.random.uniform(kb, (1, fan_out), jnp.float32, -bound, bound)
        return w, b

    k1, k2, k3 = jax.random.split(key, 3)
    w1, b1 = linear(k1, state_size, hidden_size)
    w2, b2 = linear(k2, hidden_size, hidden_size)
    w3, b3 = linear(k3, hidden_size, action_size)
    return {"w1": w1, "b1": b1, "w2": w2, "b2": b2, "w3": w3, "b3": b3}


if __name__ == "__main__":
    key = jax.random.PRNGKey(0)
    k_params, k_x = jax.random.split(key)

    batch = 512          # large enough to exercise the batch grid (2 tiles of 256)
    state_size = 16
    action_size = 8
    hidden_size = 64

    params = init_params(k_params, state_size, action_size, hidden_size)
    x = jax.random.normal(k_x, (batch, state_size), jnp.float32)

    out = qnetwork_forward(x, params, tile_b=256)
    jax.block_until_ready(out)
    assert out.shape == (batch, action_size)

    # Reference 1: same bf16-operand / f32-accumulate numerics as the kernel's MXU path.
    bf = lambda a: a.astype(jnp.bfloat16)
    h1 = jnp.maximum(jnp.dot(bf(x), bf(params["w1"]),
                             preferred_element_type=jnp.float32) + params["b1"], 0.0)
    h2 = jnp.maximum(jnp.dot(bf(h1), bf(params["w2"]),
                             preferred_element_type=jnp.float32) + params["b2"], 0.0)
    ref_bf16 = jnp.dot(bf(h2), bf(params["w3"]),
                       preferred_element_type=jnp.float32) + params["b3"]
    assert jnp.allclose(out, ref_bf16, atol=1e-2, rtol=1e-2)

    # Reference 2: full-f32 module semantics (loose tolerance due to bf16 matmul operands).
    h1f = jnp.maximum(x @ params["w1"] + params["b1"], 0.0)
    h2f = jnp.maximum(h1f @ params["w2"] + params["b2"], 0.0)
    ref_f32 = h2f @ params["w3"] + params["b3"]
    assert jnp.allclose(out, ref_f32, atol=5e-2, rtol=5e-2)

    print("KERNEL_OK")
</pallas_src>

<mosaic_0001>
module attributes {stable_mosaic.version = 11 : i64} {
  func.func @qnetwork_kernel(%arg0: i32, %arg1: memref<256x16xf32, #tpu.memory_space<vmem>>, %arg2: memref<272x128xbf16, #tpu.memory_space<vmem>>, %arg3: memref<8x128xf32, #tpu.memory_space<vmem>>, %arg4: memref<256x128xf32, #tpu.memory_space<vmem>>) attributes {dimension_semantics = [#tpu.dimension_semantics<parallel>], iteration_bounds = array<i64: 2>, scalar_prefetch = 0 : i64, scratch_operands = 0 : i64, tpu.core_type = #tpu.core_type<tc>, window_params = [{transform_indices = @transform_0, window_bounds = array<i64: 256, 16>}, {pipeline_mode = #tpu.pipeline_mode<synchronous>, transform_indices = @transform_1, window_bounds = array<i64: 272, 128>}, {pipeline_mode = #tpu.pipeline_mode<synchronous>, transform_indices = @transform_2, window_bounds = array<i64: 8, 128>}, {transform_indices = @transform_3, window_bounds = array<i64: 256, 128>}]} {
    %c0 = arith.constant 0 : index
    %c0_0 = arith.constant 0 : index
    %0 = vector.load %arg1[%c0, %c0_0] : memref<256x16xf32, #tpu.memory_space<vmem>>, vector<256x16xf32>
    %1 = arith.truncf %0 : vector<256x16xf32> to vector<256x16xbf16>
    %c0_1 = arith.constant 0 : index
    %c0_2 = arith.constant 0 : index
    %2 = vector.load %arg2[%c0_1, %c0_2] : memref<272x128xbf16, #tpu.memory_space<vmem>>, vector<16x128xbf16>
    %c16 = arith.constant 16 : index
    %c0_3 = arith.constant 0 : index
    %3 = vector.load %arg2[%c16, %c0_3] : memref<272x128xbf16, #tpu.memory_space<vmem>>, vector<128x128xbf16>
    %c144 = arith.constant 144 : index
    %c0_4 = arith.constant 0 : index
    %4 = vector.load %arg2[%c144, %c0_4] : memref<272x128xbf16, #tpu.memory_space<vmem>>, vector<128x128xbf16>
    %cst = arith.constant dense<0.000000e+00> : vector<256x128xf32>
    %5 = tpu.matmul %1, %2, %cst {dimension_numbers = #tpu.dot_dimension_numbers<[1], [0], [0], [1], [0, 0, 1, 1], [], []>} : vector<256x16xbf16>, vector<16x128xbf16>, vector<256x128xf32> -> vector<256x128xf32>
    %c0_5 = arith.constant 0 : index
    %c0_6 = arith.constant 0 : index
    %6 = vector.load %arg3[%c0_5, %c0_6] : memref<8x128xf32, #tpu.memory_space<vmem>>, vector<1x128xf32>
    %7 = vector.broadcast %6 : vector<1x128xf32> to vector<256x128xf32>
    %8 = arith.addf %5, %7 : vector<256x128xf32>
    %cst_7 = arith.constant 0.000000e+00 : f32
    %9 = vector.broadcast %cst_7 : f32 to vector<256x128xf32>
    %10 = arith.maximumf %8, %9 : vector<256x128xf32>
    %11 = arith.truncf %10 : vector<256x128xf32> to vector<256x128xbf16>
    %cst_8 = arith.constant dense<0.000000e+00> : vector<256x128xf32>
    %12 = tpu.matmul %11, %3, %cst_8 {dimension_numbers = #tpu.dot_dimension_numbers<[1], [0], [0], [1], [0, 0, 1, 1], [], []>} : vector<256x128xbf16>, vector<128x128xbf16>, vector<256x128xf32> -> vector<256x128xf32>
    %c1 = arith.constant 1 : index
    %c0_9 = arith.constant 0 : index
    %13 = vector.load %arg3[%c1, %c0_9] : memref<8x128xf32, #tpu.memory_space<vmem>>, vector<1x128xf32>
    %14 = vector.broadcast %13 : vector<1x128xf32> to vector<256x128xf32>
    %15 = arith.addf %12, %14 : vector<256x128xf32>
    %cst_10 = arith.constant 0.000000e+00 : f32
    %16 = vector.broadcast %cst_10 : f32 to vector<256x128xf32>
    %17 = arith.maximumf %15, %16 : vector<256x128xf32>
    %18 = arith.truncf %17 : vector<256x128xf32> to vector<256x128xbf16>
    %cst_11 = arith.constant dense<0.000000e+00> : vector<256x128xf32>
    %19 = tpu.matmul %18, %4, %cst_11 {dimension_numbers = #tpu.dot_dimension_numbers<[1], [0], [0], [1], [0, 0, 1, 1], [], []>} : vector<256x128xbf16>, vector<128x128xbf16>, vector<256x128xf32> -> vector<256x128xf32>
    %c2 = arith.constant 2 : index
    %c0_12 = arith.constant 0 : index
    %20 = vector.load %arg3[%c2, %c0_12] : memref<8x128xf32, #tpu.memory_space<vmem>>, vector<1x128xf32>
    %21 = vector.broadcast %20 : vector<1x128xf32> to vector<256x128xf32>
    %22 = arith.addf %19, %21 : vector<256x128xf32>
    %c0_13 = arith.constant 0 : index
    %c0_14 = arith.constant 0 : index
    %23 = vector.load %arg4[%c0_13, %c0_14] : memref<256x128xf32, #tpu.memory_space<vmem>>, vector<256x128xf32>
    tpu.vector_store %arg4[%c0_13, %c0_14], %22 {strides = array<i32>} : memref<256x128xf32, #tpu.memory_space<vmem>>, vector<256x128xf32>,
    return
  }
  func.func @transform_0(%arg0: i32) -> (i32, i32) {
    %c0_i32 = arith.constant 0 : i32
    %c0_i32_0 = arith.constant 0 : i32
    return %arg0, %c0_i32 : i32, i32
  }
  func.func @transform_1(%arg0: i32) -> (i32, i32) {
    %c0_i32 = arith.constant 0 : i32
    %c0_i32_0 = arith.constant 0 : i32
    %c0_i32_1 = arith.constant 0 : i32
    return %c0_i32, %c0_i32_0 : i32, i32
  }
  func.func @transform_2(%arg0: i32) -> (i32, i32) {
    %c0_i32 = arith.constant 0 : i32
    %c0_i32_0 = arith.constant 0 : i32
    %c0_i32_1 = arith.constant 0 : i32
    return %c0_i32, %c0_i32_0 : i32, i32
  }
  func.func @transform_3(%arg0: i32) -> (i32, i32) {
    %c0_i32 = arith.constant 0 : i32
    %c0_i32_0 = arith.constant 0 : i32
    return %arg0, %c0_i32 : i32, i32
  }
}

</mosaic_0001>

<llo_original>
// kernel: tpu_custom_call.1
$region0: #{tpu_custom_call.1}
  #allocation0 [shape = 'u32[]', space=smem, size = 0x4, offset = 0x4, fixed_abs, tag = 'smem constant byte address 0x4 - core index']
  #allocation1 [shape = 'u32[72,128]{1,0:T(1,128)}', space=vmem, size = 0x9000, scoped, tag = 'internal scratch']
  %s0 = inlined_call_operand.vmem [shape: f32[512,16], index: 0, kind: input, shape index: {}]
  %s1 = inlined_call_operand.vmem [shape: bf16[272,128], index: 1, kind: input, shape index: {}]
  %s2 = inlined_call_operand.vmem [shape: f32[8,128], index: 2, kind: input, shape index: {}]
  %s3 = inlined_call_operand.hbm [shape: f32[512,128], index: 3, kind: output, shape index: {}]
  %s4 = sld [smem:[#allocation0]]
  $region45: #{tpu_custom_call.1} parent=0
    _
  %s6 = ssub.s32 1, %s4
  %s7 = scalar_select 0, %s6, %s4
  $region1: #{tpu_custom_call.1} parent=0
    #allocation2 [shape = 'u8[262144]{0}', space=vmem, size = 0x40000, scoped, tag = 'output window, operand 0']
    #allocation3 [shape = 's32[2]{0}', space=sflag, size = 0x8, scoped, tag = 'scoped memory for tpu_custom_call.1']
    %8 = vsyncpa [#allocation3], 0
    %s9 = scalar_lea.sflag [#allocation3], 1
    %10 = vsyncpa %s9, 0
    loop: start=0, step=1, limit=4
    $region2: #{tpu_custom_call.1} parent=1 // loop_pre_header
      _
    $region3: #{tpu_custom_call.1} parent=1 // loop_header
      %s12 = sphi 0, %s16
      %p13 = scmp.ge.s32.totalorder %s12, 4
      %s22 = sphi 0, %s24
      %s25 = sphi 0, %s22
      %s26 = sphi 0, %s25
      %s42 = sphi 0, %s26
      %s46 = sphi 0, %s46
      %s48 = sphi 0, %s46
      %s49 = sphi 0, %s48
      %s63 = sphi 0, %s49
      %s67 = sphi 0, %s67
      %s69 = sphi 0, %s67
      %s70 = sphi 0, %s69
      %s84 = sphi 0, %s70
      %s90 = sphi 0, %s92
      %s93 = sphi 0, %s90
      %s94 = sphi 0, %s93
      %s110 = sphi 0, %s94
    $region4: #{tpu_custom_call.1} parent=1 // loop_header_branch
      %15 = sbr.rel (%p13) target = $region8
    $region5: #{tpu_custom_call.1} parent=1 // loop_body
      %s17 = ssub.s32 %s12, 1
      %s18 = ssub.s32 %s12, 2
      %s19 = sadd.s32 %s12, 1
      %s20 = ssub.s32 %s12, %s19
      %p21 = scmp.eq.s32.totalorder %s20, 0
      %s23 = sadd.s32 %s22, 1
      %s24 = scalar_select %p21, %s22, %s23
      %p27 = pneg %p21
      %p28 = scmp.eq.s32.totalorder %s12, 1
      %p29 = por %p27, %p28
      %p30 = scmp.ne.s32.totalorder %s22, %s25
      %p31 = scmp.eq.s32.totalorder %s12, 0
      %p32 = por %p30, %p31
      %p33 = scmp.ne.s32.totalorder %s22, %s25
      %p34 = scmp.eq.s32.totalorder %s17, 1
      %p35 = por %p33, %p34
      %p36 = scmp.ne.s32.totalorder %s25, %s26
      %p37 = scmp.eq.s32.totalorder %s17, 0
      %p38 = por %p36, %p37
      %p39 = scmp.ne.s32.totalorder %s25, %s26
      %p40 = scmp.eq.s32.totalorder %s18, 1
      %p41 = por %p39, %p40
      %p43 = scmp.ne.s32.totalorder %s26, %s42
      %p44 = scmp.eq.s32.totalorder %s18, 0
      %p45 = por %p43, %p44
      %s47 = sadd.s32 %s46, 1
      %p50 = scmp.eq.s32.totalorder %s12, 1
      %p51 = scmp.ne.s32.totalorder %s46, %s48
      %p52 = scmp.eq.s32.totalorder %s12, 0
      %p53 = por %p51, %p52
      %p54 = scmp.ne.s32.totalorder %s46, %s48
      %p55 = scmp.eq.s32.totalorder %s17, 1
      %p56 = por %p54, %p55
      %p57 = scmp.ne.s32.totalorder %s48, %s49
      %p58 = scmp.eq.s32.totalorder %s17, 0
      %p59 = por %p57, %p58
      %p60 = scmp.ne.s32.totalorder %s48, %s49
      %p61 = scmp.eq.s32.totalorder %s18, 1
      %p62 = por %p60, %p61
      %p64 = scmp.ne.s32.totalorder %s49, %s63
      %p65 = scmp.eq.s32.totalorder %s18, 0
      %p66 = por %p64, %p65
      %s68 = sadd.s32 %s67, 1
      %p71 = scmp.eq.s32.totalorder %s12, 1
      %p72 = scmp.ne.s32.totalorder %s67, %s69
      %p73 = scmp.eq.s32.totalorder %s12, 0
      %p74 = por %p72, %p73
      %p75 = scmp.ne.s32.totalorder %s67, %s69
      %p76 = scmp.eq.s32.totalorder %s17, 1
      %p77 = por %p75, %p76
      %p78 = scmp.ne.s32.totalorder %s69, %s70
      %p79 = scmp.eq.s32.totalorder %s17, 0
      %p80 = por %p78, %p79
      %p81 = scmp.ne.s32.totalorder %s69, %s70
      %p82 = scmp.eq.s32.totalorder %s18, 1
      %p83 = por %p81, %p82
      %p85 = scmp.ne.s32.totalorder %s70, %s84
      %p86 = scmp.eq.s32.totalorder %s18, 0
      %p87 = por %p85, %p86
      %s88 = ssub.s32 %s12, %s19
      %p89 = scmp.eq.s32.totalorder %s88, 0
      %s91 = sadd.s32 %s90, 1
      %s92 = scalar_select %p89, %s90, %s91
      %p95 = pneg %p89
      %p96 = scmp.eq.s32.totalorder %s12, 1
      %p97 = por %p95, %p96
      %p98 = scmp.ne.s32.totalorder %s90, %s93
      %p99 = scmp.eq.s32.totalorder %s12, 0
      %p100 = por %p98, %p99
      %p101 = scmp.ne.s32.totalorder %s90, %s93
      %p102 = scmp.eq.s32.totalorder %s17, 1
      %p103 = por %p101, %p102
      %p104 = scmp.ne.s32.totalorder %s93, %s94
      %p105 = scmp.eq.s32.totalorder %s17, 0
      %p106 = por %p104, %p105
      %p107 = scmp.ne.s32.totalorder %s93, %s94
      %p108 = scmp.eq.s32.totalorder %s18, 1
      %p109 = por %p107, %p108
      %p111 = scmp.ne.s32.totalorder %s94, %s110
      %p112 = scmp.eq.s32.totalorder %s18, 0
      %p113 = por %p111, %p112
      %p114 = scmp.le.s32.totalorder 1, %s12
      %p115 = scmp.lt.s32.totalorder %s12, 3
      %p116 = pnand %p114, %p115
      %p117 = pneg %p116
      // Predicated region
      $region9: #{tpu_custom_call.1} parent=5 // pred_check
        _
      $region10: #{tpu_custom_call.1} parent=5 // pred_check_branch
        %119 = sbr.rel (%p116) target = $region12
      $region11: #{tpu_custom_call.1} parent=5 // pred_region
        %s120 = ssub.s32 %s12, 1
        // Predicated region
        $region13: #{tpu_custom_call.1} parent=11 // pred_check
          %p121 = pneg %p59
        $region14: #{tpu_custom_call.1} parent=11 // pred_check_branch
          %123 = sbr.rel (%p121) target = $region16
        $region15: #{tpu_custom_call.1} parent=11 // pred_region
          _
        $region16: #{tpu_custom_call.1} parent=11 // pred_fallthru
          _
        // Predicated region
        $region17: #{tpu_custom_call.1} parent=11 // pred_check
          %p124 = pneg %p80
        $region18: #{tpu_custom_call.1} parent=11 // pred_check_branch
          %126 = sbr.rel (%p124) target = $region20
        $region19: #{tpu_custom_call.1} parent=11 // pred_region
          _
        $region20: #{tpu_custom_call.1} parent=11 // pred_fallthru
          _
      $region12: #{tpu_custom_call.1} parent=5 // pred_fallthru
        _
      %p127 = scmp.lt.s32.totalorder %s12, 2
      // Predicated region
      $region21: #{tpu_custom_call.1} parent=5 // pred_check
        %p128 = pneg %p127
      $region22: #{tpu_custom_call.1} parent=5 // pred_check_branch
        %130 = sbr.rel (%p128) target = $region24
      $region23: #{tpu_custom_call.1} parent=5 // pred_region
        // Predicated region
        $region25: #{tpu_custom_call.1} parent=23 // pred_check
          %p131 = pneg %p32
        $region26: #{tpu_custom_call.1} parent=23 // pred_check_branch
          %133 = sbr.rel (%p131) target = $region28
        $region27: #{tpu_custom_call.1} parent=23 // pred_region
          %s134 = smul.u32 32, %s12
          %p135 = scmp.lt.s32.totalorder %s134, 63
          %s136 = scalar_select %p135, %s134, 63
          %s137 = smul.addr %s136, 8
          %s138 = scalar_lea.vmem %s0, %s137
          %s139 = smul.u32 32, %s12
        $region28: #{tpu_custom_call.1} parent=23 // pred_fallthru
          _
      $region24: #{tpu_custom_call.1} parent=5 // pred_fallthru
        _
      %p140 = scmp.le.s32.totalorder 1, %s12
      %p141 = scmp.lt.s32.totalorder %s12, 3
      %p142 = pnand %p140, %p141
      %p143 = pneg %p142
      // Predicated region
      $region29: #{tpu_custom_call.1} parent=5 // pred_check
        _
      $region30: #{tpu_custom_call.1} parent=5 // pred_check_branch
        %145 = sbr.rel (%p142) target = $region32
      $region31: #{tpu_custom_call.1} parent=5 // pred_region
        %s146 = ssub.s32 %s12, 1
        %s147 = smul.u32 32, %s17
        %p148 = scmp.lt.s32.totalorder %s147, 63
        %s149 = scalar_select %p148, %s147, 63
        %s150 = smul.addr %s149, 8
        %s151 = scalar_lea.vmem %s0, %s150
        %p152 = pneg %p38
        %p153 = pneg %p35
        %p154 = pneg %p59
        %p155 = pneg %p56
        %p156 = pneg %p80
        %p157 = pneg %p77
        %p158 = pneg %p106
        %p159 = pneg %p103
        %s160 = sand.u32 %s93, 1
        %s161 = scalar_lea.sflag [#allocation3], %s160
        %s162 = sand.u32 %s93, 1
        %s163 = smul.addr %s162, 256
        %s164 = scalar_lea.vmem [#allocation2], %s163
        %s165 = smul.u32 32, %s17
        %p166 = scmp.lt.s32.totalorder %s165, 63
        %s167 = scalar_select %p166, %s165, 63
        %s168 = smul.addr %s167, 8
        %s169 = scalar_lea.vmem %s0, %s168
        %s170 = smul.u32 32, %s17
        %s171 = smul.u32 32, %s17
        %v173 = vld [vmem:[%s169] sm:$0xff]
        %v174 = vld [vmem:[%s169 + $0x8] sm:$0xff]
        %v175 = vld [vmem:[%s169 + $0x10] sm:$0xff]
        %v176 = vld [vmem:[%s169 + $0x18] sm:$0xff]
        %v177 = vld [vmem:[%s169 + $0x20] sm:$0xff]
        %v178 = vld [vmem:[%s169 + $0x28] sm:$0xff]
        %v179 = vld [vmem:[%s169 + $0x30] sm:$0xff]
        %v180 = vld [vmem:[%s169 + $0x38] sm:$0xff]
        %v181 = vld [vmem:[%s169 + $0x40] sm:$0xff]
        %v182 = vld [vmem:[%s169 + $0x48] sm:$0xff]
        %v183 = vld [vmem:[%s169 + $0x50] sm:$0xff]
        %v184 = vld [vmem:[%s169 + $0x58] sm:$0xff]
        %v185 = vld [vmem:[%s169 + $0x60] sm:$0xff]
        %v186 = vld [vmem:[%s169 + $0x68] sm:$0xff]
        %v187 = vld [vmem:[%s169 + $0x70] sm:$0xff]
        %v188 = vld [vmem:[%s169 + $0x78] sm:$0xff]
        %v189 = vld [vmem:[%s169 + $0x80] sm:$0xff]
        %v190 = vld [vmem:[%s169 + $0x88] sm:$0xff]
        %v191 = vld [vmem:[%s169 + $0x90] sm:$0xff]
        %v192 = vld [vmem:[%s169 + $0x98] sm:$0xff]
        %v193 = vld [vmem:[%s169 + $0xa0] sm:$0xff]
        %v194 = vld [vmem:[%s169 + $0xa8] sm:$0xff]
        %v195 = vld [vmem:[%s169 + $0xb0] sm:$0xff]
        %v196 = vld [vmem:[%s169 + $0xb8] sm:$0xff]
        %v197 = vld [vmem:[%s169 + $0xc0] sm:$0xff]
        %v198 = vld [vmem:[%s169 + $0xc8] sm:$0xff]
        %v199 = vld [vmem:[%s169 + $0xd0] sm:$0xff]
        %v200 = vld [vmem:[%s169 + $0xd8] sm:$0xff]
        %v201 = vld [vmem:[%s169 + $0xe0] sm:$0xff]
        %v202 = vld [vmem:[%s169 + $0xe8] sm:$0xff]
        %v203 = vld [vmem:[%s169 + $0xf0] sm:$0xff]
        %v204 = vld [vmem:[%s169 + $0xf8] sm:$0xff]
        %v205 = vpack.c.bf16 %v174, %v173
        %v206 = vpack.c.bf16 %v176, %v175
        %v207 = vpack.c.bf16 %v178, %v177
        %v208 = vpack.c.bf16 %v180, %v179
        %v209 = vpack.c.bf16 %v182, %v181
        %v210 = vpack.c.bf16 %v184, %v183
        %v211 = vpack.c.bf16 %v186, %v185
        %v212 = vpack.c.bf16 %v188, %v187
        %v213 = vpack.c.bf16 %v190, %v189
        %v214 = vpack.c.bf16 %v192, %v191
        %v215 = vpack.c.bf16 %v194, %v193
        %v216 = vpack.c.bf16 %v196, %v195
        %v217 = vpack.c.bf16 %v198, %v197
        %v218 = vpack.c.bf16 %v200, %v199
        %v219 = vpack.c.bf16 %v202, %v201
        %v220 = vpack.c.bf16 %v204, %v203
        %v221 = vld [vmem:[%s1] sm:$0xf]
        %v222 = vld [vmem:[%s1 + $0x4] sm:$0xf]
        %v223 = vld [vmem:[%s1 + $0x8] sm:$0xf]
        %v224 = vld [vmem:[%s1 + $0xc] sm:$0xf]
        %v225 = vld [vmem:[%s1 + $0x10] sm:$0xf]
        %v226 = vld [vmem:[%s1 + $0x14] sm:$0xf]
        %v227 = vld [vmem:[%s1 + $0x18] sm:$0xf]
        %v228 = vld [vmem:[%s1 + $0x1c] sm:$0xf]
        %v229 = vld [vmem:[%s1 + $0x20] sm:$0xf]
        %v230 = vld [vmem:[%s1 + $0x24] sm:$0xf]
        %v231 = vld [vmem:[%s1 + $0x28] sm:$0xf]
        %v232 = vld [vmem:[%s1 + $0x2c] sm:$0xf]
        %v233 = vld [vmem:[%s1 + $0x30] sm:$0xf]
        %v234 = vld [vmem:[%s1 + $0x34] sm:$0xf]
        %v235 = vld [vmem:[%s1 + $0x38] sm:$0xf]
        %v236 = vld [vmem:[%s1 + $0x3c] sm:$0xf]
        %v237 = vld [vmem:[%s1 + $0x40] sm:$0xf]
        %v238 = vld [vmem:[%s1 + $0x44] sm:$0xf]
        %v239 = vld [vmem:[%s1 + $0x48] sm:$0xf]
        %v240 = vld [vmem:[%s1 + $0x4c] sm:$0xf]
        %v241 = vld [vmem:[%s1 + $0x50] sm:$0xf]
        %v242 = vld [vmem:[%s1 + $0x54] sm:$0xf]
        %v243 = vld [vmem:[%s1 + $0x58] sm:$0xf]
        %v244 = vld [vmem:[%s1 + $0x5c] sm:$0xf]
        %v245 = vld [vmem:[%s1 + $0x60] sm:$0xf]
        %v246 = vld [vmem:[%s1 + $0x64] sm:$0xf]
        %v247 = vld [vmem:[%s1 + $0x68] sm:$0xf]
        %v248 = vld [vmem:[%s1 + $0x6c] sm:$0xf]
        %v249 = vld [vmem:[%s1 + $0x70] sm:$0xf]
        %v250 = vld [vmem:[%s1 + $0x74] sm:$0xf]
        %v251 = vld [vmem:[%s1 + $0x78] sm:$0xf]
        %v252 = vld [vmem:[%s1 + $0x7c] sm:$0xf]
        %v253 = vld [vmem:[%s1 + $0x80] sm:$0xf]
        %v254 = vld [vmem:[%s1 + $0x84] sm:$0xf]
        %v255 = vld [vmem:[%s2] sm:$0x1]
        %v256 = vperm.slane %v255, 0
        %v259 = vunpack.c.l.b16 %v221
        %v260 = vunpack.c.l.b16 %v222
        %v261 = vpack.c.b16 %v260, %v259
        %vm263 = vcmask 130048
        %v265 = vsel %vm263, %v205, 0
        %v268 = vsel %vm263, %v206, 0
        %v271 = vsel %vm263, %v207, 0
        %v274 = vsel %vm263, %v208, 0
        %v277 = vsel %vm263, %v209, 0
        %v280 = vsel %vm263, %v210, 0
        %v283 = vsel %vm263, %v211, 0
        %v286 = vsel %vm263, %v212, 0
        %v289 = vsel %vm263, %v213, 0
        %v292 = vsel %vm263, %v214, 0
        %v295 = vsel %vm263, %v215, 0
        %v298 = vsel %vm263, %v216, 0
        %v301 = vsel %vm263, %v217, 0
        %v304 = vsel %vm263, %v218, 0
        %v307 = vsel %vm263, %v219, 0
        %v310 = vsel %vm263, %v220, 0
        %312 = vmatpush.bf16.msra.mxu0 0
        %313 = vmatpush.bf16.msra.mxu0 0
        %314 = vmatpush.bf16.msra.mxu0 0
        %315 = vmatpush.bf16.msra.mxu0 0
        %316 = vmatpush.bf16.msra.mxu0 0
        %317 = vmatpush.bf16.msra.mxu0 0
        %318 = vmatpush.bf16.msra.mxu0 0
        %319 = vmatpush.bf16.msra.mxu0 %v261
        %320 = vmatmul.bf16.gmra.mxu0 %v265
        %v321 = vpop.f32.mrf.mxu0
        %v322 = vadd.f32 %v256, %v321
        %v323 = vpop.f32.mrf.mxu0
        %v324 = vadd.f32 %v256, %v323
        %325 = vmatmul.bf16.gmra.mxu0 %v268
        %v326 = vpop.f32.mrf.mxu0
        %v327 = vadd.f32 %v256, %v326
        %v328 = vpop.f32.mrf.mxu0
        %v329 = vadd.f32 %v256, %v328
        %330 = vmatmul.bf16.gmra.mxu0 %v271
        %v331 = vpop.f32.mrf.mxu0
        %v332 = vadd.f32 %v256, %v331
        %v333 = vpop.f32.mrf.mxu0
        %v334 = vadd.f32 %v256, %v333
        %335 = vmatmul.bf16.gmra.mxu0 %v274
        %v336 = vpop.f32.mrf.mxu0
        %v337 = vadd.f32 %v256, %v336
        %v338 = vpop.f32.mrf.mxu0
        %v339 = vadd.f32 %v256, %v338
        %340 = vmatmul.bf16.gmra.mxu0 %v277
        %v341 = vpop.f32.mrf.mxu0
        %v342 = vadd.f32 %v256, %v341
        %v343 = vpop.f32.mrf.mxu0
        %v344 = vadd.f32 %v256, %v343
        %345 = vmatmul.bf16.gmra.mxu0 %v280
        %v346 = vpop.f32.mrf.mxu0
        %v347 = vadd.f32 %v256, %v346
        %v348 = vpop.f32.mrf.mxu0
        %v349 = vadd.f32 %v256, %v348
        %350 = vmatmul.bf16.gmra.mxu0 %v283
        %v351 = vpop.f32.mrf.mxu0
        %v352 = vadd.f32 %v256, %v351
        %v353 = vpop.f32.mrf.mxu0
        %v354 = vadd.f32 %v256, %v353
        %355 = vmatmul.bf16.gmra.mxu0 %v286
        %v356 = vpop.f32.mrf.mxu0
        %v357 = vadd.f32 %v256, %v356
        %v358 = vpop.f32.mrf.mxu0
        %v359 = vadd.f32 %v256, %v358
        %360 = vmatmul.bf16.gmra.mxu0 %v289
        %v361 = vpop.f32.mrf.mxu0
        %v362 = vadd.f32 %v256, %v361
        %v363 = vpop.f32.mrf.mxu0
        %v364 = vadd.f32 %v256, %v363
        %365 = vmatmul.bf16.gmra.mxu0 %v292
        %v366 = vpop.f32.mrf.mxu0
        %v367 = vadd.f32 %v256, %v366
        %v368 = vpop.f32.mrf.mxu0
        %v369 = vadd.f32 %v256, %v368
        %370 = vmatmul.bf16.gmra.mxu0 %v295
        %v371 = vpop.f32.mrf.mxu0
        %v372 = vadd.f32 %v256, %v371
        %v373 = vpop.f32.mrf.mxu0
        %v374 = vadd.f32 %v256, %v373
        %375 = vmatmul.bf16.gmra.mxu0 %v298
        %v376 = vpop.f32.mrf.mxu0
        %v377 = vadd.f32 %v256, %v376
        %v378 = vpop.f32.mrf.mxu0
        %v379 = vadd.f32 %v256, %v378
        %380 = vmatmul.bf16.gmra.mxu0 %v301
        %v381 = vpop.f32.mrf.mxu0
        %v382 = vadd.f32 %v256, %v381
        %v383 = vpop.f32.mrf.mxu0
        %v384 = vadd.f32 %v256, %v383
        %385 = vmatmul.bf16.gmra.mxu0 %v304
        %v386 = vpop.f32.mrf.mxu0
        %v387 = vadd.f32 %v256, %v386
        %v388 = vpop.f32.mrf.mxu0
        %v389 = vadd.f32 %v256, %v388
        %390 = vmatmul.bf16.gmra.mxu0 %v307
        %v391 = vpop.f32.mrf.mxu0
        %v392 = vadd.f32 %v256, %v391
        %v393 = vpop.f32.mrf.mxu0
        %v394 = vadd.f32 %v256, %v393
        %395 = vmatmul.bf16.gmra.mxu0 %v310
        %v396 = vpop.f32.mrf.mxu0
        %v397 = vadd.f32 %v256, %v396
        %v398 = vpop.f32.mrf.mxu0
        %v399 = vadd.f32 %v256, %v398
        %400 = vdwg.mxu0
        %v401 = vmax.f32 %v322, 0.0
        %v402 = vmax.f32 %v324, 0.0
        %v403 = vmax.f32 %v327, 0.0
        %v404 = vmax.f32 %v329, 0.0
        %v405 = vmax.f32 %v332, 0.0
        %v406 = vmax.f32 %v334, 0.0
        %v407 = vmax.f32 %v337, 0.0
        %v408 = vmax.f32 %v339, 0.0
        %v409 = vmax.f32 %v342, 0.0
        %v410 = vmax.f32 %v344, 0.0
        %v411 = vmax.f32 %v347, 0.0
        %v412 = vmax.f32 %v349, 0.0
        %v413 = vmax.f32 %v352, 0.0
        %v414 = vmax.f32 %v354, 0.0
        %v415 = vmax.f32 %v357, 0.0
        %v416 = vmax.f32 %v359, 0.0
        %v417 = vmax.f32 %v362, 0.0
        %v418 = vmax.f32 %v364, 0.0
        %v419 = vmax.f32 %v367, 0.0
        %v420 = vmax.f32 %v369, 0.0
        %v421 = vmax.f32 %v372, 0.0
        %v422 = vmax.f32 %v374, 0.0
        %v423 = vmax.f32 %v377, 0.0
        %v424 = vmax.f32 %v379, 0.0
        %v425 = vmax.f32 %v382, 0.0
        %v426 = vmax.f32 %v384, 0.0
        %v427 = vmax.f32 %v387, 0.0
        %v428 = vmax.f32 %v389, 0.0
        %v429 = vmax.f32 %v392, 0.0
        %v430 = vmax.f32 %v394, 0.0
        %v431 = vmax.f32 %v397, 0.0
        %v432 = vmax.f32 %v399, 0.0
        %v433 = vpack.c.bf16 %v402, %v401
        %v434 = vpack.c.bf16 %v404, %v403
        %v435 = vpack.c.bf16 %v406, %v405
        %v436 = vpack.c.bf16 %v408, %v407
        %v437 = vpack.c.bf16 %v410, %v409
        %v438 = vpack.c.bf16 %v412, %v411
        %v439 = vpack.c.bf16 %v414, %v413
        %v440 = vpack.c.bf16 %v416, %v415
        %v441 = vpack.c.bf16 %v418, %v417
        %v442 = vpack.c.bf16 %v420, %v419
        %v443 = vpack.c.bf16 %v422, %v421
        %v444 = vpack.c.bf16 %v424, %v423
        %v445 = vpack.c.bf16 %v426, %v425
        %v446 = vpack.c.bf16 %v428, %v427
        %v447 = vpack.c.bf16 %v430, %v429
        %v448 = vpack.c.bf16 %v432, %v431
        %v449 = vld [vmem:[%s2 + $0x1] sm:$0x1]
        %v450 = vperm.slane %v449, 0
        %v467 = vunpack.c.l.b16 %v223
        %v468 = vunpack.c.l.b16 %v224
        %v469 = vunpack.c.l.b16 %v225
        %v470 = vunpack.c.l.b16 %v226
        %v471 = vunpack.c.l.b16 %v227
        %v472 = vunpack.c.l.b16 %v228
        %v473 = vunpack.c.l.b16 %v229
        %v474 = vunpack.c.l.b16 %v230
        %v475 = vunpack.c.l.b16 %v231
        %v476 = vunpack.c.l.b16 %v232
        %v477 = vunpack.c.l.b16 %v233
        %v478 = vunpack.c.l.b16 %v234
        %v479 = vunpack.c.l.b16 %v235
        %v480 = vunpack.c.l.b16 %v236
        %v481 = vunpack.c.l.b16 %v237
        %v482 = vunpack.c.l.b16 %v238
        %v483 = vpack.c.b16 %v468, %v467
        %v484 = vpack.c.b16 %v470, %v469
        %v485 = vpack.c.b16 %v472, %v471
        %v486 = vpack.c.b16 %v474, %v473
        %v487 = vpack.c.b16 %v476, %v475
        %v488 = vpack.c.b16 %v478, %v477
        %v489 = vpack.c.b16 %v480, %v479
        %v490 = vpack.c.b16 %v482, %v481
        %499 = vmatpush.bf16.msra.mxu0 %v490
        %500 = vmatpush.bf16.msra.mxu0 %v489
        %501 = vmatpush.bf16.msra.mxu0 %v488
        %502 = vmatpush.bf16.msra.mxu0 %v487
        %503 = vmatpush.bf16.msra.mxu0 %v486
        %504 = vmatpush.bf16.msra.mxu0 %v485
        %505 = vmatpush.bf16.msra.mxu0 %v484
        %506 = vmatpush.bf16.msra.mxu0 %v483
        %507 = vmatmul.bf16.gmra.mxu0 %v433
        %v508 = vpop.f32.mrf.mxu0
        %v509 = vadd.f32 %v450, %v508
        %v510 = vpop.f32.mrf.mxu0
        %v511 = vadd.f32 %v450, %v510
        %512 = vmatmul.bf16.gmra.mxu0 %v434
        %v513 = vpop.f32.mrf.mxu0
        %v514 = vadd.f32 %v450, %v513
        %v515 = vpop.f32.mrf.mxu0
        %v516 = vadd.f32 %v450, %v515
        %517 = vmatmul.bf16.gmra.mxu0 %v435
        %v518 = vpop.f32.mrf.mxu0
        %v519 = vadd.f32 %v450, %v518
        %v520 = vpop.f32.mrf.mxu0
        %v521 = vadd.f32 %v450, %v520
        %522 = vmatmul.bf16.gmra.mxu0 %v436
        %v523 = vpop.f32.mrf.mxu0
        %v524 = vadd.f32 %v450, %v523
        %v525 = vpop.f32.mrf.mxu0
        %v526 = vadd.f32 %v450, %v525
        %527 = vmatmul.bf16.gmra.mxu0 %v437
        %v528 = vpop.f32.mrf.mxu0
        %v529 = vadd.f32 %v450, %v528
        %v530 = vpop.f32.mrf.mxu0
        %v531 = vadd.f32 %v450, %v530
        %532 = vmatmul.bf16.gmra.mxu0 %v438
        %v533 = vpop.f32.mrf.mxu0
        %v534 = vadd.f32 %v450, %v533
        %v535 = vpop.f32.mrf.mxu0
        %v536 = vadd.f32 %v450, %v535
        %537 = vmatmul.bf16.gmra.mxu0 %v439
        %v538 = vpop.f32.mrf.mxu0
        %v539 = vadd.f32 %v450, %v538
        %v540 = vpop.f32.mrf.mxu0
        %v541 = vadd.f32 %v450, %v540
        %542 = vmatmul.bf16.gmra.mxu0 %v440
        %v543 = vpop.f32.mrf.mxu0
        %v544 = vadd.f32 %v450, %v543
        %v545 = vpop.f32.mrf.mxu0
        %v546 = vadd.f32 %v450, %v545
        %547 = vmatmul.bf16.gmra.mxu0 %v441
        %v548 = vpop.f32.mrf.mxu0
        %v549 = vadd.f32 %v450, %v548
        %v550 = vpop.f32.mrf.mxu0
        %v551 = vadd.f32 %v450, %v550
        %552 = vmatmul.bf16.gmra.mxu0 %v442
        %v553 = vpop.f32.mrf.mxu0
        %v554 = vadd.f32 %v450, %v553
        %v555 = vpop.f32.mrf.mxu0
        %v556 = vadd.f32 %v450, %v555
        %557 = vmatmul.bf16.gmra.mxu0 %v443
        %v558 = vpop.f32.mrf.mxu0
        %v559 = vadd.f32 %v450, %v558
        %v560 = vpop.f32.mrf.mxu0
        %v561 = vadd.f32 %v450, %v560
        %562 = vmatmul.bf16.gmra.mxu0 %v444
        %v563 = vpop.f32.mrf.mxu0
        %v564 = vadd.f32 %v450, %v563
        %v565 = vpop.f32.mrf.mxu0
        %v566 = vadd.f32 %v450, %v565
        %567 = vmatmul.bf16.gmra.mxu0 %v445
        %v568 = vpop.f32.mrf.mxu0
        %v569 = vadd.f32 %v450, %v568
        %v570 = vpop.f32.mrf.mxu0
        %v571 = vadd.f32 %v450, %v570
        %572 = vmatmul.bf16.gmra.mxu0 %v446
        %v573 = vpop.f32.mrf.mxu0
        %v574 = vadd.f32 %v450, %v573
        %v575 = vpop.f32.mrf.mxu0
        %v576 = vadd.f32 %v450, %v575
        %577 = vmatmul.bf16.gmra.mxu0 %v447
        %v578 = vpop.f32.mrf.mxu0
        %v579 = vadd.f32 %v450, %v578
        %v580 = vpop.f32.mrf.mxu0
        %v581 = vadd.f32 %v450, %v580
        %582 = vmatmul.bf16.gmra.mxu0 %v448
        %v583 = vpop.f32.mrf.mxu0
        %v584 = vadd.f32 %v450, %v583
        %v585 = vpop.f32.mrf.mxu0
        %v586 = vadd.f32 %v450, %v585
        %587 = vdwg.mxu0
        %v588 = vmax.f32 %v509, 0.0
        %v589 = vmax.f32 %v511, 0.0
        %v590 = vmax.f32 %v514, 0.0
        %v591 = vmax.f32 %v516, 0.0
        %v592 = vmax.f32 %v519, 0.0
        %v593 = vmax.f32 %v521, 0.0
        %v594 = vmax.f32 %v524, 0.0
        %v595 = vmax.f32 %v526, 0.0
        %v596 = vmax.f32 %v529, 0.0
        %v597 = vmax.f32 %v531, 0.0
        %v598 = vmax.f32 %v534, 0.0
        %v599 = vmax.f32 %v536, 0.0
        %v600 = vmax.f32 %v539, 0.0
        %v601 = vmax.f32 %v541, 0.0
        %v602 = vmax.f32 %v544, 0.0
        %v603 = vmax.f32 %v546, 0.0
        %v604 = vmax.f32 %v549, 0.0
        %v605 = vmax.f32 %v551, 0.0
        %v606 = vmax.f32 %v554, 0.0
        %v607 = vmax.f32 %v556, 0.0
        %v608 = vmax.f32 %v559, 0.0
        %v609 = vmax.f32 %v561, 0.0
        %v610 = vmax.f32 %v564, 0.0
        %v611 = vmax.f32 %v566, 0.0
        %v612 = vmax.f32 %v569, 0.0
        %v613 = vmax.f32 %v571, 0.0
        %v614 = vmax.f32 %v574, 0.0
        %v615 = vmax.f32 %v576, 0.0
        %v616 = vmax.f32 %v579, 0.0
        %v617 = vmax.f32 %v581, 0.0
        %v618 = vmax.f32 %v584, 0.0
        %v619 = vmax.f32 %v586, 0.0
        %v620 = vpack.c.bf16 %v589, %v588
        %v621 = vpack.c.bf16 %v591, %v590
        %v622 = vpack.c.bf16 %v593, %v592
        %v623 = vpack.c.bf16 %v595, %v594
        %v624 = vpack.c.bf16 %v597, %v596
        %v625 = vpack.c.bf16 %v599, %v598
        %v626 = vpack.c.bf16 %v601, %v600
        %v627 = vpack.c.bf16 %v603, %v602
        %v628 = vpack.c.bf16 %v605, %v604
        %v629 = vpack.c.bf16 %v607, %v606
        %v630 = vpack.c.bf16 %v609, %v608
        %v631 = vpack.c.bf16 %v611, %v610
        %v632 = vpack.c.bf16 %v613, %v612
        %v633 = vpack.c.bf16 %v615, %v614
        %v634 = vpack.c.bf16 %v617, %v616
        %v635 = vpack.c.bf16 %v619, %v618
        %v636 = vld [vmem:[%s2 + $0x2] sm:$0x1]
        %v637 = vperm.slane %v636, 0
        %v654 = vunpack.c.l.b16 %v239
        %v655 = vunpack.c.l.b16 %v240
        %v656 = vunpack.c.l.b16 %v241
        %v657 = vunpack.c.l.b16 %v242
        %v658 = vunpack.c.l.b16 %v243
        %v659 = vunpack.c.l.b16 %v244
        %v660 = vunpack.c.l.b16 %v245
        %v661 = vunpack.c.l.b16 %v246
        %v662 = vunpack.c.l.b16 %v247
        %v663 = vunpack.c.l.b16 %v248
        %v664 = vunpack.c.l.b16 %v249
        %v665 = vunpack.c.l.b16 %v250
        %v666 = vunpack.c.l.b16 %v251
        %v667 = vunpack.c.l.b16 %v252
        %v668 = vunpack.c.l.b16 %v253
        %v669 = vunpack.c.l.b16 %v254
        %v670 = vpack.c.b16 %v655, %v654
        %v671 = vpack.c.b16 %v657, %v656
        %v672 = vpack.c.b16 %v659, %v658
        %v673 = vpack.c.b16 %v661, %v660
        %v674 = vpack.c.b16 %v663, %v662
        %v675 = vpack.c.b16 %v665, %v664
        %v676 = vpack.c.b16 %v667, %v666
        %v677 = vpack.c.b16 %v669, %v668
        %686 = vmatpush.bf16.msra.mxu0 %v677
        %687 = vmatpush.bf16.msra.mxu0 %v676
        %688 = vmatpush.bf16.msra.mxu0 %v675
        %689 = vmatpush.bf16.msra.mxu0 %v674
        %690 = vmatpush.bf16.msra.mxu0 %v673
        %691 = vmatpush.bf16.msra.mxu0 %v672
        %692 = vmatpush.bf16.msra.mxu0 %v671
        %693 = vmatpush.bf16.msra.mxu0 %v670
        %694 = vmatmul.bf16.gmra.mxu0 %v620
        %v695 = vpop.f32.mrf.mxu0
        %v696 = vadd.f32 %v637, %v695
        %v697 = vpop.f32.mrf.mxu0
        %v698 = vadd.f32 %v637, %v697
        %699 = vmatmul.bf16.gmra.mxu0 %v621
        %v700 = vpop.f32.mrf.mxu0
        %v701 = vadd.f32 %v637, %v700
        %v702 = vpop.f32.mrf.mxu0
        %v703 = vadd.f32 %v637, %v702
        %704 = vmatmul.bf16.gmra.mxu0 %v622
        %v705 = vpop.f32.mrf.mxu0
        %v706 = vadd.f32 %v637, %v705
        %v707 = vpop.f32.mrf.mxu0
        %v708 = vadd.f32 %v637, %v707
        %709 = vmatmul.bf16.gmra.mxu0 %v623
        %v710 = vpop.f32.mrf.mxu0
        %v711 = vadd.f32 %v637, %v710
        %v712 = vpop.f32.mrf.mxu0
        %v713 = vadd.f32 %v637, %v712
        %714 = vmatmul.bf16.gmra.mxu0 %v624
        %v715 = vpop.f32.mrf.mxu0
        %v716 = vadd.f32 %v637, %v715
        %v717 = vpop.f32.mrf.mxu0
        %v718 = vadd.f32 %v637, %v717
        %719 = vmatmul.bf16.gmra.mxu0 %v625
        %v720 = vpop.f32.mrf.mxu0
        %v721 = vadd.f32 %v637, %v720
        %v722 = vpop.f32.mrf.mxu0
        %v723 = vadd.f32 %v637, %v722
        %724 = vmatmul.bf16.gmra.mxu0 %v626
        %v725 = vpop.f32.mrf.mxu0
        %v726 = vadd.f32 %v637, %v725
        %v727 = vpop.f32.mrf.mxu0
        %v728 = vadd.f32 %v637, %v727
        %729 = vmatmul.bf16.gmra.mxu0 %v627
        %v730 = vpop.f32.mrf.mxu0
        %v731 = vadd.f32 %v637, %v730
        %v732 = vpop.f32.mrf.mxu0
        %v733 = vadd.f32 %v637, %v732
        %734 = vmatmul.bf16.gmra.mxu0 %v628
        %v735 = vpop.f32.mrf.mxu0
        %v736 = vadd.f32 %v637, %v735
        %v737 = vpop.f32.mrf.mxu0
        %v738 = vadd.f32 %v637, %v737
        %739 = vmatmul.bf16.gmra.mxu0 %v629
        %v740 = vpop.f32.mrf.mxu0
        %v741 = vadd.f32 %v637, %v740
        %v742 = vpop.f32.mrf.mxu0
        %v743 = vadd.f32 %v637, %v742
        %744 = vmatmul.bf16.gmra.mxu0 %v630
        %v745 = vpop.f32.mrf.mxu0
        %v746 = vadd.f32 %v637, %v745
        %v747 = vpop.f32.mrf.mxu0
        %v748 = vadd.f32 %v637, %v747
        %749 = vmatmul.bf16.gmra.mxu0 %v631
        %v750 = vpop.f32.mrf.mxu0
        %v751 = vadd.f32 %v637, %v750
        %v752 = vpop.f32.mrf.mxu0
        %v753 = vadd.f32 %v637, %v752
        %754 = vmatmul.bf16.gmra.mxu0 %v632
        %v755 = vpop.f32.mrf.mxu0
        %v756 = vadd.f32 %v637, %v755
        %v757 = vpop.f32.mrf.mxu0
        %v758 = vadd.f32 %v637, %v757
        %759 = vmatmul.bf16.gmra.mxu0 %v633
        %v760 = vpop.f32.mrf.mxu0
        %v761 = vadd.f32 %v637, %v760
        %v762 = vpop.f32.mrf.mxu0
        %v763 = vadd.f32 %v637, %v762
        %764 = vmatmul.bf16.gmra.mxu0 %v634
        %v765 = vpop.f32.mrf.mxu0
        %v766 = vadd.f32 %v637, %v765
        %v767 = vpop.f32.mrf.mxu0
        %v768 = vadd.f32 %v637, %v767
        %769 = vmatmul.bf16.gmra.mxu0 %v635
        %v770 = vpop.f32.mrf.mxu0
        %v771 = vadd.f32 %v637, %v770
        %v772 = vpop.f32.mrf.mxu0
        %v773 = vadd.f32 %v637, %v772
        %774 = vdwg.mxu0
        %775 = vst [vmem:[%s164] sm:$0xff] %v696
        %776 = vst [vmem:[%s164 + $0x8] sm:$0xff] %v698
        %777 = vst [vmem:[%s164 + $0x10] sm:$0xff] %v701
        %778 = vst [vmem:[%s164 + $0x18] sm:$0xff] %v703
        %779 = vst [vmem:[%s164 + $0x20] sm:$0xff] %v706
        %780 = vst [vmem:[%s164 + $0x28] sm:$0xff] %v708
        %781 = vst [vmem:[%s164 + $0x30] sm:$0xff] %v711
        %782 = vst [vmem:[%s164 + $0x38] sm:$0xff] %v713
        %783 = vst [vmem:[%s164 + $0x40] sm:$0xff] %v716
        %784 = vst [vmem:[%s164 + $0x48] sm:$0xff] %v718
        %785 = vst [vmem:[%s164 + $0x50] sm:$0xff] %v721
        %786 = vst [vmem:[%s164 + $0x58] sm:$0xff] %v723
        %787 = vst [vmem:[%s164 + $0x60] sm:$0xff] %v726
        %788 = vst [vmem:[%s164 + $0x68] sm:$0xff] %v728
        %789 = vst [vmem:[%s164 + $0x70] sm:$0xff] %v731
        %790 = vst [vmem:[%s164 + $0x78] sm:$0xff] %v733
        %791 = vst [vmem:[%s164 + $0x80] sm:$0xff] %v736
        %792 = vst [vmem:[%s164 + $0x88] sm:$0xff] %v738
        %793 = vst [vmem:[%s164 + $0x90] sm:$0xff] %v741
        %794 = vst [vmem:[%s164 + $0x98] sm:$0xff] %v743
        %795 = vst [vmem:[%s164 + $0xa0] sm:$0xff] %v746
        %796 = vst [vmem:[%s164 + $0xa8] sm:$0xff] %v748
        %797 = vst [vmem:[%s164 + $0xb0] sm:$0xff] %v751
        %798 = vst [vmem:[%s164 + $0xb8] sm:$0xff] %v753
        %799 = vst [vmem:[%s164 + $0xc0] sm:$0xff] %v756
        %800 = vst [vmem:[%s164 + $0xc8] sm:$0xff] %v758
        %801 = vst [vmem:[%s164 + $0xd0] sm:$0xff] %v761
        %802 = vst [vmem:[%s164 + $0xd8] sm:$0xff] %v763
        %803 = vst [vmem:[%s164 + $0xe0] sm:$0xff] %v766
        %804 = vst [vmem:[%s164 + $0xe8] sm:$0xff] %v768
        %805 = vst [vmem:[%s164 + $0xf0] sm:$0xff] %v771
        %806 = vst [vmem:[%s164 + $0xf8] sm:$0xff] %v773
        %s807 = sand.u32 %s93, 1
        %s808 = scalar_lea.sflag [#allocation3], %s807
        %s809 = sand.u32 %s93, 1
        %s810 = smul.addr %s809, 256
        %s811 = scalar_lea.vmem [#allocation2], %s810
        // Predicated region
        $region33: #{tpu_custom_call.1} parent=31 // pred_check
          %p812 = pneg %p103
        $region34: #{tpu_custom_call.1} parent=31 // pred_check_branch
          %814 = sbr.rel (%p812) target = $region36
        $region35: #{tpu_custom_call.1} parent=31 // pred_region
          %s815 = smul.u32 32, %s17
          %817 = vsyncadd %s808, 0
          %s818 = smul.addr %s815, 8
          %s819 = scalar_lea.hbm %s3, %s818
          %s820 = sshll.u32 %s811, 4
          %s821 = int_to_ptr.vmem [resolvable:$true] %s820
          %s822 = sshll.u32 %s819, 4
          %s823 = int_to_ptr.hbm [resolvable:$true] %s822
          %828 = dma.vmem_to_hbm [thread:$0]  %s821, 4096, %s823, %s808, 128, 128, 8
        $region36: #{tpu_custom_call.1} parent=31 // pred_fallthru
          _
      $region32: #{tpu_custom_call.1} parent=5 // pred_fallthru
        _
      %p829 = scmp.le.s32.totalorder 2, %s12
      // Predicated region
      $region37: #{tpu_custom_call.1} parent=5 // pred_check
        %p830 = pneg %p829
      $region38: #{tpu_custom_call.1} parent=5 // pred_check_branch
        %832 = sbr.rel (%p830) target = $region40
      $region39: #{tpu_custom_call.1} parent=5 // pred_region
        %s833 = ssub.s32 %s12, 2
        // Predicated region
        $region41: #{tpu_custom_call.1} parent=39 // pred_check
          %p834 = pneg %p109
        $region42: #{tpu_custom_call.1} parent=39 // pred_check_branch
          %836 = sbr.rel (%p834) target = $region44
        $region43: #{tpu_custom_call.1} parent=39 // pred_region
          %s837 = sand.u32 %s94, 1
          %s838 = scalar_lea.sflag [#allocation3], %s837
          %s839 = sand.u32 %s94, 1
          %s840 = smul.addr %s839, 256
          %s841 = scalar_lea.vmem [#allocation2], %s840
          %843 = dma.done %s838, 4096
        $region44: #{tpu_custom_call.1} parent=39 // pred_fallthru
          _
      $region40: #{tpu_custom_call.1} parent=5 // pred_fallthru
        _
    $region6: #{tpu_custom_call.1} parent=1 // loop_footer
      %s16 = sadd.s32 1, %s12
    $region7: #{tpu_custom_call.1} parent=1 // loop_footer_branch
      %11 = sbr.rel target = $region3
    $region8: #{tpu_custom_call.1} parent=1 // loop_exit
      _
    %844 = vsyncpa [#allocation3], 1
    %s845 = scalar_lea.sflag [#allocation3], 1
    %846 = vsyncpa %s845, 1

</llo_original>
